<compile_context>
chip_gen: v7x
topology: tpu7x:2x2x1
jax: 0.10.0
libtpu: 0.0.40
codegen_flags: <defaults>
</compile_context>

<pallas_src>
import functools

import jax
import jax.numpy as jnp
from jax.experimental import pallas as pl
from jax.experimental.pallas import tpu as pltpu


def _laplacian_kernel(x_ref, out_ref, *, n_planes_total, planes_per_block):
    """One grid step = a stack of `planes_per_block` (batch*channel) planes.

    x_ref   : VMEM (P, H, W) input planes, original dtype
    out_ref : VMEM (1, 8, 128) f32; every element holds this block's partial
              sum of |L*x| (the wrapper reads element [g, 0, 0]).
    """
    P, H, W = x_ref.shape
    Ho, Wo = H - 2, W - 2
    is_bf16 = x_ref.dtype == jnp.bfloat16

    g = pl.program_id(0)
    # Valid planes in this block: the last block may be ragged; its
    # out-of-range planes hold unspecified VMEM data and are never read.
    valid = jnp.minimum(
        jnp.int32(planes_per_block),
        jnp.int32(n_planes_total) - g * jnp.int32(planes_per_block))

    def plane_sum(p, carry):
        xp = x_ref[p]                                        # (H, W), native dtype
        if is_bf16:
            # bf16 vertical [1,4,1] pass (packed bf16 VALU on v6e/v7x), then
            # upcast for the horizontal pass / accumulation / abs.
            cy = (xp[0:Ho, :] + 4.0 * xp[1:Ho + 1, :]
                  + xp[2:Ho + 2, :]).astype(jnp.float32)      # (Ho, W)
            center = xp[1:Ho + 1, 1:Wo + 1].astype(jnp.float32)
        else:
            xf = xp.astype(jnp.float32)
            cy = xf[0:Ho, :] + 4.0 * xf[1:Ho + 1, :] + xf[2:Ho + 2, :]
            center = xf[1:Ho + 1, 1:Wo + 1]
        # [[1,4,1],[4,-20,4],[1,4,1]] == outer([1,4,1],[1,4,1]) - 36*center
        acc = (cy[:, 0:Wo] + 4.0 * cy[:, 1:Wo + 1] + cy[:, 2:Wo + 2]
               - 36.0 * center)                               # (Ho, Wo)
        # TODO(synk): on v7x the off-by-one lane slices of cy could be replaced
        # by pltpu.roll(cy, +/-1, axis=-1) plus a hoisted 2-column border mask
        # to move the shifts from the VALU/load slots onto the idle XLU.
        return carry + jnp.sum(jnp.abs(acc))

    total = jax.lax.fori_loop(0, valid, plane_sum, jnp.float32(0.0))

    # Splat the partial sum across the aligned (8,128) tile (one unmasked
    # vector store, no iota/select); the wrapper reads [g, 0, 0].
    out_ref[...] = jnp.broadcast_to(total, out_ref.shape)


def _pick_vmem_limit_bytes():
    """Scoped-VMEM limit: ~3/4 of physical VMEM, capped at 96 MiB.

    128 MiB parts (v5e/v6e) -> 96 MiB; 64 MiB parts (v7x) -> 48 MiB. If the
    hardware query is unavailable, assume the smaller (v7x) VMEM so the limit
    never overshoots physical capacity.
    """
    cap = None
    try:
        info = pltpu.get_tpu_info()
        cap = getattr(info, "vmem_capacity_bytes", None)
    except Exception:
        cap = None
    if not cap:
        cap = 64 * 1024 * 1024
    return int(min(96 * 1024 * 1024, (int(cap) * 3) // 4))


def _choose_planes_per_step(n_planes, max_planes):
    """Planes per grid step: prefer an even number of grid steps (>=2) so the
    'parallel' axis load-balances across both v7x TensorCores, then the
    largest block within `max_planes`."""
    max_planes = max(1, min(int(max_planes), n_planes))
    g_lo = -(-n_planes // max_planes)          # fewest possible steps
    best = None
    for g in range(g_lo, g_lo + 8):            # small search over step counts
        p = -(-n_planes // g)
        if p < 1:
            break
        g_actual = -(-n_planes // p)
        balanced = (g_actual % 2 == 0) or (n_planes == 1)
        cand = (balanced, -g_actual, p)        # even grid, then fewest steps
        if best is None or cand > best:
            best = cand
    return best[2]


def discrete_laplacian(x, *, planes_per_step=None):
    """x: (B, 3, H, W) NCHW, any float dtype.

    Returns mean(|depthwise 3x3 Laplacian conv(x)|) as an f32 scalar, matching
    the PyTorch DiscreteLaplacian forward pass.
    """
    B, C, H, W = x.shape
    assert C == 3, "module is defined for 3 input channels (groups=3)"
    assert H >= 3 and W >= 3
    Ho, Wo = H - 2, W - 2
    N = B * C

    # Depthwise conv with identical per-channel weights == independent
    # per-plane stencil, so flatten (B, C) into one plane axis (free reshape).
    # Keep the source dtype in HBM; the kernel upcasts per plane.
    x_flat = x.reshape(N, H, W)

    plane_in_bytes = H * W * x_flat.dtype.itemsize
    plane_f32_bytes = H * W * 4
    vmem_limit = _pick_vmem_limit_bytes()

    if planes_per_step is None:
        # VMEM need ~= 2 * input block (double buffering) + ~4 plane-sized f32
        # temporaries (per-plane loop) + headroom for outputs / Mosaic scratch.
        headroom = 6 * 1024 * 1024
        avail = vmem_limit - headroom - 4 * plane_f32_bytes
        max_by_vmem = max(1, avail // (2 * plane_in_bytes)) if avail > 0 else 1
        # ~16 MiB blocks amortize the ~0.35us/step overhead to a few percent
        # while keeping the pipeline's exposed first-block DMA small.
        target_block = 16 * 1024 * 1024
        max_by_target = max(1, target_block // plane_in_bytes)
        planes_per_step = _choose_planes_per_step(
            N, min(max_by_vmem, max_by_target))
    P = int(planes_per_step)
    G = pl.cdiv(N, P)
    # TODO(synk): planes whose single-plane block + f32 temporaries exceed the
    # VMEM limit (e.g. f32 4K images, worst on v7x's 64 MiB) need an extra
    # H-strip grid axis with a 2-row halo; not implemented here.

    kernel = functools.partial(
        _laplacian_kernel, n_planes_total=N, planes_per_block=P)

    partials = pl.pallas_call(
        kernel,
        out_shape=jax.ShapeDtypeStruct((G, 8, 128), jnp.float32),
        grid=(G,),
        in_specs=[pl.BlockSpec((P, H, W), lambda g: (g, 0, 0))],
        out_specs=pl.BlockSpec((1, 8, 128), lambda g: (g, 0, 0)),
        compiler_params=pltpu.CompilerParams(
            # Per-block partial sums are independent -> parallel grid axis
            # (shards blocks across both TensorCores on v7x).
            dimension_semantics=("parallel",),
            vmem_limit_bytes=int(vmem_limit),
        ),
    )(x_flat)

    total = jnp.sum(partials[:, 0, 0])
    return total / jnp.float32(N * Ho * Wo)


def _reference(x):
    """Pure-JAX reference (9-tap form, independent of the kernel's algebra)."""
    w = jnp.array([[1.0, 4.0, 1.0],
                   [4.0, -20.0, 4.0],
                   [1.0, 4.0, 1.0]], dtype=jnp.float32)
    B, C, H, W = x.shape
    Ho, Wo = H - 2, W - 2
    xf = x.astype(jnp.float32)
    acc = jnp.zeros((B, C, Ho, Wo), jnp.float32)
    for dy in range(3):
        for dx in range(3):
            acc = acc + w[dy, dx] * xf[:, :, dy:dy + Ho, dx:dx + Wo]
    return jnp.mean(jnp.abs(acc))


if __name__ == "__main__":
    key = jax.random.PRNGKey(0)
    x = jax.random.normal(key, (2, 3, 16, 16), dtype=jnp.float32)

    out = discrete_laplacian(x)
    out = jax.block_until_ready(out)

    ref = _reference(x)
    assert jnp.allclose(out, ref, rtol=1e-5, atol=1e-5), (out, ref)
    print("KERNEL_OK")
</pallas_src>

<mosaic_0001>
module attributes {stable_mosaic.version = 11 : i64} {
  func.func @_laplacian_kernel(%arg0: i32, %arg1: memref<3x16x16xf32, #tpu.memory_space<vmem>>, %arg2: memref<1x8x128xf32, #tpu.memory_space<vmem>>) attributes {dimension_semantics = [#tpu.dimension_semantics<parallel>], iteration_bounds = array<i64: 2>, scalar_prefetch = 0 : i64, scratch_operands = 0 : i64, tpu.core_type = #tpu.core_type<tc>, window_params = [{transform_indices = @transform_0, window_bounds = array<i64: 3, 16, 16>}, {transform_indices = @transform_1, window_bounds = array<i64: 1, 8, 128>}]} {
    %c3_i32 = arith.constant 3 : i32
    %0 = arith.muli %arg0, %c3_i32 : i32
    %c6_i32 = arith.constant 6 : i32
    %1 = arith.subi %c6_i32, %0 : i32
    %c3_i32_0 = arith.constant 3 : i32
    %2 = arith.minsi %c3_i32_0, %1 : i32
    %c0_i32 = arith.constant 0 : i32
    %cst = arith.constant 0.000000e+00 : f32
    %3 = arith.subi %2, %c0_i32 : i32
    %4 = arith.addi %c0_i32, %3 : i32
    %c1_i32 = arith.constant 1 : i32
    %5 = scf.for %arg3 = %c0_i32 to %4 step %c1_i32 iter_args(%arg4 = %cst) -> (f32)  : i32 {
      %8 = arith.index_cast %arg3 : i32 to index
      %c0_3 = arith.constant 0 : index
      %c0_4 = arith.constant 0 : index
      %9 = vector.load %arg1[%8, %c0_3, %c0_4] : memref<3x16x16xf32, #tpu.memory_space<vmem>>, vector<1x16x16xf32>
      %10 = vector.shape_cast %9 : vector<1x16x16xf32> to vector<16x16xf32>
      %11 = vector.extract_strided_slice %10 {offsets = [0, 0], sizes = [14, 16], strides = [1, 1]} : vector<16x16xf32> to vector<14x16xf32>
      %12 = vector.extract_strided_slice %10 {offsets = [1, 0], sizes = [14, 16], strides = [1, 1]} : vector<16x16xf32> to vector<14x16xf32>
      %cst_5 = arith.constant 4.000000e+00 : f32
      %13 = vector.broadcast %cst_5 : f32 to vector<14x16xf32>
      %14 = arith.mulf %13, %12 : vector<14x16xf32>
      %15 = arith.addf %11, %14 : vector<14x16xf32>
      %16 = vector.extract_strided_slice %10 {offsets = [2, 0], sizes = [14, 16], strides = [1, 1]} : vector<16x16xf32> to vector<14x16xf32>
      %17 = arith.addf %15, %16 : vector<14x16xf32>
      %18 = vector.extract_strided_slice %10 {offsets = [1, 1], sizes = [14, 14], strides = [1, 1]} : vector<16x16xf32> to vector<14x14xf32>
      %19 = vector.extract_strided_slice %17 {offsets = [0, 0], sizes = [14, 14], strides = [1, 1]} : vector<14x16xf32> to vector<14x14xf32>
      %20 = vector.extract_strided_slice %17 {offsets = [0, 1], sizes = [14, 14], strides = [1, 1]} : vector<14x16xf32> to vector<14x14xf32>
      %cst_6 = arith.constant 4.000000e+00 : f32
      %21 = vector.broadcast %cst_6 : f32 to vector<14x14xf32>
      %22 = arith.mulf %21, %20 : vector<14x14xf32>
      %23 = arith.addf %19, %22 : vector<14x14xf32>
      %24 = vector.extract_strided_slice %17 {offsets = [0, 2], sizes = [14, 14], strides = [1, 1]} : vector<14x16xf32> to vector<14x14xf32>
      %25 = arith.addf %23, %24 : vector<14x14xf32>
      %cst_7 = arith.constant 3.600000e+01 : f32
      %26 = vector.broadcast %cst_7 : f32 to vector<14x14xf32>
      %27 = arith.mulf %26, %18 : vector<14x14xf32>
      %28 = arith.subf %25, %27 : vector<14x14xf32>
      %29 = math.absf %28 : vector<14x14xf32>
      %30 = vector.shape_cast %29 : vector<14x14xf32> to vector<1x14x14xf32>
      %cst_8 = arith.constant dense<0.000000e+00> : vector<1xf32>
      %31 = vector.multi_reduction <add>, %30, %cst_8 [1, 2] : vector<1x14x14xf32> to vector<1xf32>
      %32 = vector.shape_cast %31 : vector<1xf32> to vector<1x1x1xf32>
      %33 = vector.extract %32[0, 0, 0] : f32 from vector<1x1x1xf32>
      %34 = arith.addf %arg4, %33 : f32
      scf.yield %34 : f32
    }
    %6 = vector.broadcast %5 : f32 to vector<1x8x128xf32>
    %c0 = arith.constant 0 : index
    %c0_1 = arith.constant 0 : index
    %c0_2 = arith.constant 0 : index
    %7 = vector.load %arg2[%c0, %c0_1, %c0_2] : memref<1x8x128xf32, #tpu.memory_space<vmem>>, vector<1x8x128xf32>
    tpu.vector_store %arg2[%c0, %c0_1, %c0_2], %6 {strides = array<i32>} : memref<1x8x128xf32, #tpu.memory_space<vmem>>, vector<1x8x128xf32>,
    return
  }
  func.func @transform_0(%arg0: i32) -> (i32, i32, i32) {
    %c0_i32 = arith.constant 0 : i32
    %c0_i32_0 = arith.constant 0 : i32
    %c0_i32_1 = arith.constant 0 : i32
    return %arg0, %c0_i32, %c0_i32_0 : i32, i32, i32
  }
  func.func @transform_1(%arg0: i32) -> (i32, i32, i32) {
    %c0_i32 = arith.constant 0 : i32
    %c0_i32_0 = arith.constant 0 : i32
    %c0_i32_1 = arith.constant 0 : i32
    return %arg0, %c0_i32, %c0_i32_0 : i32, i32, i32
  }
}

</mosaic_0001>

<llo_original>
// kernel: tpu_custom_call.1
$region0: #{tpu_custom_call.1}
  #allocation0 [shape = 'u32[]', space=smem, size = 0x4, offset = 0x4, fixed_abs, tag = 'smem constant byte address 0x4 - core index']
  #allocation1 [shape = 'u32[144,128]{1,0:T(1,128)}', space=vmem, size = 0x12000, scoped, tag = 'internal scratch']
  %s0 = inlined_call_operand.hbm [shape: f32[6,16,16], index: 0, kind: input, shape index: {}]
  %s1 = inlined_call_operand.hbm [shape: f32[2,8,128], index: 1, kind: output, shape index: {}]
  %s2 = sld [smem:[#allocation0]]
  $region48: #{tpu_custom_call.1} parent=0
    _
  %s4 = ssub.s32 1, %s2
  %s5 = scalar_select 0, %s4, %s2
  $region1: #{tpu_custom_call.1} parent=0
    #allocation2 [shape = 'u8[49152]{0}', space=vmem, size = 0xc000, scoped, tag = 'input window, operand 0']
    #allocation3 [shape = 's32[2]{0}', space=sflag, size = 0x8, scoped, tag = 'scoped memory for tpu_custom_call.1']
    #allocation4 [shape = 's32[2]{0}', space=sflag, size = 0x8, scoped, tag = 'scoped memory for tpu_custom_call.1']
    #allocation5 [shape = 'u8[8192]{0}', space=vmem, size = 0x2000, scoped, tag = 'output window, operand 0']
    %6 = vsyncpa [#allocation3], 0
    %s7 = scalar_lea.sflag [#allocation3], 1
    %8 = vsyncpa %s7, 0
    %9 = vsyncpa [#allocation4], 0
    %s10 = scalar_lea.sflag [#allocation4], 1
    %11 = vsyncpa %s10, 0
    loop: start=0, step=1, limit=4
    $region2: #{tpu_custom_call.1} parent=1 // loop_pre_header
      _
    $region3: #{tpu_custom_call.1} parent=1 // loop_header
      %s13 = sphi 0, %s17
      %p14 = scmp.ge.s32.totalorder %s13, 4
      %s23 = sphi 0, %s25
      %s26 = sphi 0, %s23
      %s27 = sphi 0, %s26
      %s43 = sphi 0, %s27
      %s49 = sphi 0, %s51
      %s52 = sphi 0, %s49
      %s53 = sphi 0, %s52
      %s69 = sphi 0, %s53
    $region4: #{tpu_custom_call.1} parent=1 // loop_header_branch
      %16 = sbr.rel (%p14) target = $region8
    $region5: #{tpu_custom_call.1} parent=1 // loop_body
      %s18 = ssub.s32 %s13, 1
      %s19 = ssub.s32 %s13, 2
      %s20 = sadd.s32 %s13, 1
      %s21 = ssub.s32 %s13, %s20
      %p22 = scmp.eq.s32.totalorder %s21, 0
      %s24 = sadd.s32 %s23, 1
      %s25 = scalar_select %p22, %s23, %s24
      %p28 = pneg %p22
      %p29 = scmp.eq.s32.totalorder %s13, 1
      %p30 = por %p28, %p29
      %p31 = scmp.ne.s32.totalorder %s23, %s26
      %p32 = scmp.eq.s32.totalorder %s13, 0
      %p33 = por %p31, %p32
      %p34 = scmp.ne.s32.totalorder %s23, %s26
      %p35 = scmp.eq.s32.totalorder %s18, 1
      %p36 = por %p34, %p35
      %p37 = scmp.ne.s32.totalorder %s26, %s27
      %p38 = scmp.eq.s32.totalorder %s18, 0
      %p39 = por %p37, %p38
      %p40 = scmp.ne.s32.totalorder %s26, %s27
      %p41 = scmp.eq.s32.totalorder %s19, 1
      %p42 = por %p40, %p41
      %p44 = scmp.ne.s32.totalorder %s27, %s43
      %p45 = scmp.eq.s32.totalorder %s19, 0
      %p46 = por %p44, %p45
      %s47 = ssub.s32 %s13, %s20
      %p48 = scmp.eq.s32.totalorder %s47, 0
      %s50 = sadd.s32 %s49, 1
      %s51 = scalar_select %p48, %s49, %s50
      %p54 = pneg %p48
      %p55 = scmp.eq.s32.totalorder %s13, 1
      %p56 = por %p54, %p55
      %p57 = scmp.ne.s32.totalorder %s49, %s52
      %p58 = scmp.eq.s32.totalorder %s13, 0
      %p59 = por %p57, %p58
      %p60 = scmp.ne.s32.totalorder %s49, %s52
      %p61 = scmp.eq.s32.totalorder %s18, 1
      %p62 = por %p60, %p61
      %p63 = scmp.ne.s32.totalorder %s52, %s53
      %p64 = scmp.eq.s32.totalorder %s18, 0
      %p65 = por %p63, %p64
      %p66 = scmp.ne.s32.totalorder %s52, %s53
      %p67 = scmp.eq.s32.totalorder %s19, 1
      %p68 = por %p66, %p67
      %p70 = scmp.ne.s32.totalorder %s53, %s69
      %p71 = scmp.eq.s32.totalorder %s19, 0
      %p72 = por %p70, %p71
      %p73 = scmp.le.s32.totalorder 1, %s13
      %p74 = scmp.lt.s32.totalorder %s13, 3
      %p75 = pnand %p73, %p74
      %p76 = pneg %p75
      // Predicated region
      $region9: #{tpu_custom_call.1} parent=5 // pred_check
        _
      $region10: #{tpu_custom_call.1} parent=5 // pred_check_branch
        %78 = sbr.rel (%p75) target = $region12
      $region11: #{tpu_custom_call.1} parent=5 // pred_region
        %s79 = ssub.s32 %s13, 1
      $region12: #{tpu_custom_call.1} parent=5 // pred_fallthru
        _
      %p80 = scmp.lt.s32.totalorder %s13, 2
      // Predicated region
      $region13: #{tpu_custom_call.1} parent=5 // pred_check
        %p81 = pneg %p80
      $region14: #{tpu_custom_call.1} parent=5 // pred_check_branch
        %83 = sbr.rel (%p81) target = $region16
      $region15: #{tpu_custom_call.1} parent=5 // pred_region
        // Predicated region
        $region17: #{tpu_custom_call.1} parent=15 // pred_check
          %p84 = pneg %p33
        $region18: #{tpu_custom_call.1} parent=15 // pred_check_branch
          %86 = sbr.rel (%p84) target = $region20
        $region19: #{tpu_custom_call.1} parent=15 // pred_region
          %s87 = sand.u32 %s23, 1
          %s88 = scalar_lea.sflag [#allocation3], %s87
          %s89 = sand.u32 %s23, 1
          %s90 = smul.addr %s89, 48
          %s91 = scalar_lea.vmem [#allocation2], %s90
          %s92 = smul.u32 3, %s13
          %s94 = ssub.s32 768, 768
          %95 = vsyncadd %s88, %s94
          %s96 = smul.addr %s92, 2
          %s97 = smul.addr %s96, 128
          %s98 = scalar_lea.hbm %s0, %s97
          %s99 = sshll.u32 %s91, 4
          %s100 = int_to_ptr.vmem [resolvable:$true] %s99
          %105 = dma.hbm_to_vmem [thread:$0]  %s98, 768, %s100, %s88, 128, 128, 8
        $region20: #{tpu_custom_call.1} parent=15 // pred_fallthru
          _
      $region16: #{tpu_custom_call.1} parent=5 // pred_fallthru
        _
      %p106 = scmp.le.s32.totalorder 1, %s13
      %p107 = scmp.lt.s32.totalorder %s13, 3
      %p108 = pnand %p106, %p107
      %p109 = pneg %p108
      // Predicated region
      $region21: #{tpu_custom_call.1} parent=5 // pred_check
        _
      $region22: #{tpu_custom_call.1} parent=5 // pred_check_branch
        %111 = sbr.rel (%p108) target = $region24
      $region23: #{tpu_custom_call.1} parent=5 // pred_region
        %s112 = ssub.s32 %s13, 1
        %s113 = sand.u32 %s26, 1
        %s114 = scalar_lea.sflag [#allocation3], %s113
        %s115 = sand.u32 %s26, 1
        %s116 = smul.addr %s115, 48
        %s117 = scalar_lea.vmem [#allocation2], %s116
        // Predicated region
        $region25: #{tpu_custom_call.1} parent=23 // pred_check
          %p118 = pneg %p39
        $region26: #{tpu_custom_call.1} parent=23 // pred_check_branch
          %120 = sbr.rel (%p118) target = $region28
        $region27: #{tpu_custom_call.1} parent=23 // pred_region
          %121 = dma.done %s114, 768
        $region28: #{tpu_custom_call.1} parent=23 // pred_fallthru
          _
        %s122 = sand.u32 %s26, 1
        %s123 = scalar_lea.sflag [#allocation3], %s122
        %s124 = sand.u32 %s26, 1
        %s125 = smul.addr %s124, 48
        %s126 = scalar_lea.vmem [#allocation2], %s125
        %p127 = pneg %p39
        %p128 = pneg %p36
        %p129 = pneg %p65
        %p130 = pneg %p62
        %s131 = sand.u32 %s52, 1
        %s132 = scalar_lea.sflag [#allocation4], %s131
        %s133 = sand.u32 %s52, 1
        %s134 = smul.addr %s133, 8
        %s135 = scalar_lea.vmem [#allocation5], %s134
        %s136 = smul.u32 3, %s18
        %s137 = smul.u32 %s18, 3
        %s138 = ssub.s32 6, %s137
        %p139 = scmp.lt.s32.totalorder %s138, 3
        %s140 = scalar_select %p139, %s138, 3
        // While loop
        $region29: #{tpu_custom_call.1} parent=23 // loop_pre_header
          _
        $region30: #{tpu_custom_call.1} parent=23 // loop_header
          %s142 = sphi 0, %s144
          %p143 = scmp.ge.s32.totalorder %s142, %s140
          %s147 = sphi 0.0, %s227
        $region31: #{tpu_custom_call.1} parent=23 // loop_header_branch
          %146 = sbr.rel (%p143) target = $region35
        $region32: #{tpu_custom_call.1} parent=23 // loop_body
          %s148 = smul.u32 %s142, 16
          %s149 = scalar_lea.vmem %s117, %s148 [#allocation2]
          %v150 = vld [vmem:[%s149] sm:$0xff]
          %v151 = vld [vmem:[%s149 + $0x8] sm:$0xff]
          %v152 = vmul.f32 %v150, 4.0
          %v153 = vmul.f32 %v151, 4.0
          %vm156 = vcmask 1046528
          %v157 = vrot.slane %v152, 1
          %v158 = vrot.slane %v153, 1
          %v159 = vsel %vm156, %v157, %v158
          %v162 = vadd.f32 %v150, %v159
          %v163 = vadd.f32 %v151, %v158
          %vm166 = vcmask 1045504
          %v167 = vrot.slane %v150, 2
          %v168 = vrot.slane %v151, 2
          %v169 = vsel %vm166, %v167, %v168
          %v172 = vadd.f32 %v162, %v169
          %v173 = vadd.f32 %v163, %v168
          %v174 = vmul.f32 %v172, 4.0
          %v175 = vmul.f32 %v173, 4.0
          %178 = vrot.lane.b32.xlu0 %v174, 127
          %v179 = vpop.permute.xlu0 %178
          %180 = vrot.lane.b32.xlu0 %v175, 127
          %v181 = vpop.permute.xlu0 %180
          %v184 = vadd.f32 %v172, %v179
          %v185 = vadd.f32 %v173, %v181
          %188 = vrot.lane.b32.xlu0 %v172, 126
          %v189 = vpop.permute.xlu0 %188
          %190 = vrot.lane.b32.xlu0 %v173, 126
          %v191 = vpop.permute.xlu0 %190
          %v194 = vadd.f32 %v184, %v189
          %v195 = vadd.f32 %v185, %v191
          %v196 = vmul.f32 %v150, 36.0
          %v197 = vmul.f32 %v151, 36.0
          %v200 = vrot.slane %v196, 1
          %v201 = vrot.slane %v197, 1
          %v202 = vsel %vm156, %v200, %v201
          %203 = vrot.lane.b32.xlu0 %v202, 127
          %v204 = vpop.permute.xlu0 %203
          %205 = vrot.lane.b32.xlu0 %v201, 127
          %v206 = vpop.permute.xlu0 %205
          %v209 = vsub.f32 %v194, %v204
          %v210 = vsub.f32 %v195, %v206
          %v211 = vand.u32 2147483647, %v209
          %v212 = vand.u32 2147483647, %v210
          %vm213 = vcmask 113664
          %v214 = vsel %vm213, %v211, 0.0
          %vm215 = vcmask 111616
          %v216 = vsel %vm215, %v212, 0.0
          %v217 = vadd.f32 %v214, %v216
          %218 = vadd.xlane.f32.xlu0 %v217
          %v219 = vpop.xlane.xlu0 %218
          %v220 = vrot.slane %v219, 4
          %v221 = vadd.f32 %v219, %v220
          %v222 = vrot.slane %v221, 2
          %v223 = vadd.f32 %v221, %v222
          %v224 = vrot.slane %v223, 1
          %v225 = vadd.f32 %v223, %v224
          %s226 = vtos %v225
          %s227 = sadd.f32 %s147, %s226
        $region33: #{tpu_custom_call.1} parent=23 // loop_footer
          %s144 = sadd.s32 %s142, 1
        $region34: #{tpu_custom_call.1} parent=23 // loop_footer_branch
          %141 = sbr.rel target = $region30
        $region35: #{tpu_custom_call.1} parent=23 // loop_exit
          _
        %v228 = vstv %s147
        %229 = vst [vmem:[%s135] sm:$0xff] %v228
        %s230 = sand.u32 %s52, 1
        %s231 = scalar_lea.sflag [#allocation4], %s230
        %s232 = sand.u32 %s52, 1
        %s233 = smul.addr %s232, 8
        %s234 = scalar_lea.vmem [#allocation5], %s233
        // Predicated region
        $region36: #{tpu_custom_call.1} parent=23 // pred_check
          %p235 = pneg %p62
        $region37: #{tpu_custom_call.1} parent=23 // pred_check_branch
          %237 = sbr.rel (%p235) target = $region39
        $region38: #{tpu_custom_call.1} parent=23 // pred_region
          %s239 = ssub.s32 128, 128
          %240 = vsyncadd %s231, %s239
          %s241 = smul.addr %s18, 128
          %s242 = scalar_lea.hbm %s1, %s241
          %s244 = sshll.u32 %s234, 4
          %s245 = int_to_ptr.vmem [resolvable:$true] %s244
          %247 = dma.vmem_to_hbm [thread:$0]  %s245, 128, %s242, %s231
        $region39: #{tpu_custom_call.1} parent=23 // pred_fallthru
          _
      $region24: #{tpu_custom_call.1} parent=5 // pred_fallthru
        _
      %p248 = scmp.le.s32.totalorder 2, %s13
      // Predicated region
      $region40: #{tpu_custom_call.1} parent=5 // pred_check
        %p249 = pneg %p248
      $region41: #{tpu_custom_call.1} parent=5 // pred_check_branch
        %251 = sbr.rel (%p249) target = $region43
      $region42: #{tpu_custom_call.1} parent=5 // pred_region
        %s252 = ssub.s32 %s13, 2
        // Predicated region
        $region44: #{tpu_custom_call.1} parent=42 // pred_check
          %p253 = pneg %p68
        $region45: #{tpu_custom_call.1} parent=42 // pred_check_branch
          %255 = sbr.rel (%p253) target = $region47
        $region46: #{tpu_custom_call.1} parent=42 // pred_region
          %s256 = sand.u32 %s53, 1
          %s257 = scalar_lea.sflag [#allocation4], %s256
          %s258 = sand.u32 %s53, 1
          %s259 = smul.addr %s258, 8
          %s260 = scalar_lea.vmem [#allocation5], %s259
          %261 = dma.done %s257, 128
        $region47: #{tpu_custom_call.1} parent=42 // pred_fallthru
          _
      $region43: #{tpu_custom_call.1} parent=5 // pred_fallthru
        _
    $region6: #{tpu_custom_call.1} parent=1 // loop_footer
      %s17 = sadd.s32 1, %s13
    $region7: #{tpu_custom_call.1} parent=1 // loop_footer_branch
      %12 = sbr.rel target = $region3
    $region8: #{tpu_custom_call.1} parent=1 // loop_exit
      _
    %262 = vsyncpa [#allocation3], 1
    %s263 = scalar_lea.sflag [#allocation3], 1
    %264 = vsyncpa %s263, 1
    %265 = vsyncpa [#allocation4], 1
    %s266 = scalar_lea.sflag [#allocation4], 1
    %267 = vsyncpa %s266, 1

</llo_original>
